<compile_context>
chip_gen: v7x
topology: tpu7x:2x2x1
jax: 0.10.0
libtpu: 0.0.40
codegen_flags: <defaults>
</compile_context>

<pallas_src>
import functools

import jax
import jax.numpy as jnp
from jax.experimental import pallas as pl
from jax.experimental.pallas import tpu as pltpu

LANE = 128      # lane width (last-dim tiling)
SUBLANE = 8     # sublane width (second-to-last-dim tiling)
MAX_TB = 512    # max batch-tile rows (amortizes per-grid-step overhead)


def _round_up(n, m):
    return ((n + m - 1) // m) * m


def _batch_tiling(batch):
    """Pick (tile_rows, padded_batch). Large tiles amortize the ~0.35us/step
    overhead; >=2 grid steps (when batch permits) lets v7x shard the 'parallel' axis."""
    b_aligned = _round_up(batch, SUBLANE)
    if b_aligned <= MAX_TB:
        return b_aligned, b_aligned            # single grid step
    n_tiles = pl.cdiv(b_aligned, MAX_TB)
    tb = _round_up(pl.cdiv(b_aligned, n_tiles), SUBLANE)
    return tb, tb * n_tiles


def subnet_kernel(x_ref, w_ref, b_ref, o_ref):
    # Single fused affine + sigmoid.
    # Cast x to bf16 right before the dot (cheap VPU work hidden under MXU/DMA);
    # the MXU accumulates in f32 via preferred_element_type.
    xb = x_ref[...].astype(jnp.bfloat16)
    logits = jnp.dot(xb, w_ref[...], preferred_element_type=jnp.float32)
    logits = logits + b_ref[...]                              # (tb, n_pad) f32 bias add (VPU)
    # sigmoid epilogue in f32 (EUP exp + VPU); lane-dense unmasked store.
    o_ref[...] = jax.nn.sigmoid(logits).astype(o_ref.dtype)


def prepare_params(w1, b1, w2, b2):
    """One-time weight prep — call once and reuse across forward calls.

    Folds fc1 + op_layer into a single affine map (valid at inference: Dropout(0.5)
    is the identity in eval mode), zero-pads the output dim to a multiple of 128
    lanes, and casts the fused weight to bf16 for the MXU.
    """
    in_features, hidden = w1.shape
    assert w2.shape[0] == hidden
    op_neurons = w2.shape[1]
    n_pad = _round_up(op_neurons, LANE)

    w1f = w1.astype(jnp.float32)
    w2f = w2.astype(jnp.float32)
    b1f = jnp.reshape(b1, (1, hidden)).astype(jnp.float32)
    b2f = jnp.reshape(b2, (1, op_neurons)).astype(jnp.float32)

    pad_cols = ((0, 0), (0, n_pad - op_neurons))
    w_fused = jnp.pad(w1f @ w2f, pad_cols).astype(jnp.bfloat16)   # (in_features, n_pad) bf16
    b_fused = jnp.pad(b1f @ w2f + b2f, pad_cols)                  # (1, n_pad) f32
    return w_fused, b_fused, op_neurons


@functools.partial(jax.jit, static_argnames=("op_neurons", "slice_output"))
def subnet_forward(x, w_fused, b_fused, *, op_neurons, slice_output=True):
    """x: (B, in_features) f32; w_fused/b_fused from prepare_params().
    Returns (B, op_neurons) f32 probabilities (or the padded lane-dense (B, n_pad)
    slab if slice_output=False)."""
    B, in_features = x.shape
    n_pad = w_fused.shape[1]

    tb, b_pad = _batch_tiling(B)
    if b_pad != B:
        x = jnp.pad(x, ((0, b_pad - B), (0, 0)))

    cost = pl.CostEstimate(
        flops=2 * b_pad * in_features * n_pad,
        transcendentals=b_pad * n_pad,                         # sigmoid exp
        bytes_accessed=(b_pad * in_features * 4 + w_fused.size * 2
                        + b_fused.size * 4 + b_pad * n_pad * 4),
    )

    out = pl.pallas_call(
        subnet_kernel,
        out_shape=jax.ShapeDtypeStruct((b_pad, n_pad), jnp.float32),
        grid=(b_pad // tb,),
        in_specs=[
            pl.BlockSpec((tb, in_features), lambda i: (i, 0)),   # x: tiled over batch
            pl.BlockSpec((in_features, n_pad), lambda i: (0, 0)),  # fused weight: resident
            pl.BlockSpec((1, n_pad), lambda i: (0, 0)),             # fused bias: resident
        ],
        out_specs=pl.BlockSpec((tb, n_pad), lambda i: (i, 0)),
        compiler_params=pltpu.CompilerParams(
            dimension_semantics=("parallel",)),   # shards the batch axis on v7x when grid >= 2
        cost_estimate=cost,
    )(x, w_fused, b_fused)

    if slice_output:
        return out[:B, :op_neurons]
    return out[:B]


def init_params(key, in_features, hidden, op_neurons):
    """Deterministic init mimicking PyTorch nn.Linear default U(-1/sqrt(fan_in), 1/sqrt(fan_in))."""
    k1, k2, k3, k4 = jax.random.split(key, 4)
    bound1 = 1.0 / jnp.sqrt(in_features)
    bound2 = 1.0 / jnp.sqrt(hidden)
    w1 = jax.random.uniform(k1, (in_features, hidden), jnp.float32, -bound1, bound1)
    b1 = jax.random.uniform(k2, (1, hidden), jnp.float32, -bound1, bound1)
    w2 = jax.random.uniform(k3, (hidden, op_neurons), jnp.float32, -bound2, bound2)
    b2 = jax.random.uniform(k4, (1, op_neurons), jnp.float32, -bound2, bound2)
    return w1, b1, w2, b2


if __name__ == "__main__":
    # Small, forward-consistent shapes: batch=8, extractor_op_features=256,
    # hidden=512 (fixed by the module), op_neurons=8.
    B, IN_FEATURES, HIDDEN, OP_NEURONS = 8, 256, 512, 8

    key = jax.random.PRNGKey(0)
    kx, kp = jax.random.split(key)
    x = jax.random.normal(kx, (B, IN_FEATURES), jnp.float32)
    w1, b1, w2, b2 = init_params(kp, IN_FEATURES, HIDDEN, OP_NEURONS)

    # One-time weight prep (fusion + lane-pad + bf16), hoisted out of the forward path.
    w_fused, b_fused, op_n = prepare_params(w1, b1, w2, b2)

    out = subnet_forward(x, w_fused, b_fused, op_neurons=op_n)
    out = jax.block_until_ready(out)
    assert out.shape == (B, OP_NEURONS)

    # Reference 1 (tight): same fused math on bf16-rounded operands.
    xr = x.astype(jnp.bfloat16).astype(jnp.float32)
    wr = w_fused.astype(jnp.float32)[:, :OP_NEURONS]
    ref_fused = jax.nn.sigmoid(xr @ wr + b_fused[:, :OP_NEURONS])
    assert jnp.allclose(out, ref_fused, atol=2e-3, rtol=2e-2), \
        float(jnp.max(jnp.abs(out - ref_fused)))

    # Reference 2 (loose): the original two-layer f32 PyTorch-equivalent forward
    # (Dropout = identity in eval). Tolerance covers bf16 operand rounding.
    def ref_two_layer(xi):
        return jax.nn.sigmoid((xi @ w1 + b1) @ w2 + b2)

    ref_f32 = ref_two_layer(x)
    assert jnp.allclose(out, ref_f32, atol=1e-2), float(jnp.max(jnp.abs(out - ref_f32)))

    # Also exercise the ragged-batch path and the multi-tile "parallel" grid path.
    for b_extra in (13, 1032):
        xe = jax.random.normal(jax.random.PRNGKey(b_extra), (b_extra, IN_FEATURES),
                               jnp.float32)
        oe = jax.block_until_ready(subnet_forward(xe, w_fused, b_fused, op_neurons=op_n))
        assert oe.shape == (b_extra, OP_NEURONS)
        re = ref_two_layer(xe)
        assert jnp.allclose(oe, re, atol=1e-2), float(jnp.max(jnp.abs(oe - re)))

    print("KERNEL_OK")
</pallas_src>

<mosaic_0001>
module attributes {stable_mosaic.version = 11 : i64} {
  func.func @subnet_kernel(%arg0: i32, %arg1: memref<8x256xf32, #tpu.memory_space<vmem>>, %arg2: memref<256x128xbf16, #tpu.memory_space<vmem>>, %arg3: memref<1x128xf32, #tpu.memory_space<vmem>>, %arg4: memref<8x128xf32, #tpu.memory_space<vmem>>) attributes {dimension_semantics = [#tpu.dimension_semantics<parallel>], iteration_bounds = array<i64: 1>, scalar_prefetch = 0 : i64, scratch_operands = 0 : i64, tpu.core_type = #tpu.core_type<tc>, window_params = [{transform_indices = @transform_0, window_bounds = array<i64: 8, 256>}, {pipeline_mode = #tpu.pipeline_mode<synchronous>, transform_indices = @transform_1, window_bounds = array<i64: 256, 128>}, {pipeline_mode = #tpu.pipeline_mode<synchronous>, transform_indices = @transform_2, window_bounds = array<i64: 1, 128>}, {transform_indices = @transform_3, window_bounds = array<i64: 8, 128>}]} {
    %c0 = arith.constant 0 : index
    %c0_0 = arith.constant 0 : index
    %0 = vector.load %arg1[%c0, %c0_0] : memref<8x256xf32, #tpu.memory_space<vmem>>, vector<8x256xf32>
    %1 = arith.truncf %0 : vector<8x256xf32> to vector<8x256xbf16>
    %c0_1 = arith.constant 0 : index
    %c0_2 = arith.constant 0 : index
    %2 = vector.load %arg2[%c0_1, %c0_2] : memref<256x128xbf16, #tpu.memory_space<vmem>>, vector<256x128xbf16>
    %cst = arith.constant dense<0.000000e+00> : vector<8x128xf32>
    %3 = tpu.matmul %1, %2, %cst {dimension_numbers = #tpu.dot_dimension_numbers<[1], [0], [0], [1], [0, 0, 1, 1], [], []>} : vector<8x256xbf16>, vector<256x128xbf16>, vector<8x128xf32> -> vector<8x128xf32>
    %c0_3 = arith.constant 0 : index
    %c0_4 = arith.constant 0 : index
    %4 = vector.load %arg3[%c0_3, %c0_4] : memref<1x128xf32, #tpu.memory_space<vmem>>, vector<1x128xf32>
    %5 = vector.broadcast %4 : vector<1x128xf32> to vector<8x128xf32>
    %6 = arith.addf %3, %5 : vector<8x128xf32>
    %7 = arith.negf %6 : vector<8x128xf32>
    %8 = math.exp %7 : vector<8x128xf32>
    %cst_5 = arith.constant 1.000000e+00 : f32
    %9 = vector.broadcast %cst_5 : f32 to vector<8x128xf32>
    %10 = arith.addf %9, %8 : vector<8x128xf32>
    %11 = arith.divf %9, %10 : vector<8x128xf32>
    %c0_6 = arith.constant 0 : index
    %c0_7 = arith.constant 0 : index
    %12 = vector.load %arg4[%c0_6, %c0_7] : memref<8x128xf32, #tpu.memory_space<vmem>>, vector<8x128xf32>
    tpu.vector_store %arg4[%c0_6, %c0_7], %11 {strides = array<i32>} : memref<8x128xf32, #tpu.memory_space<vmem>>, vector<8x128xf32>,
    return
  }
  func.func @transform_0(%arg0: i32) -> (i32, i32) {
    %c0_i32 = arith.constant 0 : i32
    %c0_i32_0 = arith.constant 0 : i32
    return %arg0, %c0_i32 : i32, i32
  }
  func.func @transform_1(%arg0: i32) -> (i32, i32) {
    %c0_i32 = arith.constant 0 : i32
    %c0_i32_0 = arith.constant 0 : i32
    %c0_i32_1 = arith.constant 0 : i32
    return %c0_i32, %c0_i32_0 : i32, i32
  }
  func.func @transform_2(%arg0: i32) -> (i32, i32) {
    %c0_i32 = arith.constant 0 : i32
    %c0_i32_0 = arith.constant 0 : i32
    %c0_i32_1 = arith.constant 0 : i32
    return %c0_i32, %c0_i32_0 : i32, i32
  }
  func.func @transform_3(%arg0: i32) -> (i32, i32) {
    %c0_i32 = arith.constant 0 : i32
    %c0_i32_0 = arith.constant 0 : i32
    return %arg0, %c0_i32 : i32, i32
  }
}

</mosaic_0001>

<llo_original>
// kernel: subnet_forward.1
$region0: #{subnet_forward.1}
  #allocation0 [shape = 'u32[]', space=smem, size = 0x4, offset = 0x4, fixed_abs, tag = 'smem constant byte address 0x4 - core index']
  #allocation1 [shape = 'u32[144,128]{1,0:T(1,128)}', space=vmem, size = 0x12000, scoped, tag = 'internal scratch']
  %s0 = inlined_call_operand.hbm [shape: f32[8,256], index: 0, kind: input, shape index: {}]
  %s1 = inlined_call_operand.hbm [shape: bf16[256,128], index: 1, kind: input, shape index: {}]
  %s2 = inlined_call_operand.vmem [shape: f32[1,128], index: 2, kind: input, shape index: {}]
  %s3 = inlined_call_operand.hbm [shape: f32[8,128], index: 3, kind: output, shape index: {}]
  %s4 = sld [smem:[#allocation0]]
  $region30: #{subnet_forward.1} parent=0
    _
  %s6 = ssub.s32 1, %s4
  %s7 = scalar_select 0, %s6, %s4
  $region1: #{subnet_forward.1} parent=0
    #allocation2 [shape = 'u8[8192]{0}', space=vmem, size = 0x2000, scoped, tag = 'input window, operand 0, single buffered']
    #allocation3 [shape = 's32[1]{0}', space=sflag, size = 0x4, scoped, tag = 'scoped memory for subnet_forward.1']
    #allocation4 [shape = 's32[1]{0}', space=sflag, size = 0x4, scoped, tag = 'scoped memory for subnet_forward.1']
    #allocation5 [shape = 'u8[65536]{0}', space=vmem, size = 0x10000, scoped, tag = 'input window, operand 1, single buffered']
    #allocation6 [shape = 's32[1]{0}', space=sflag, size = 0x4, scoped, tag = 'scoped memory for subnet_forward.1']
    #allocation7 [shape = 'u8[4096]{0}', space=vmem, size = 0x1000, scoped, tag = 'output window, operand 0, single buffered']
    %8 = vsyncpa [#allocation3], 0
    %9 = vsyncpa [#allocation6], 0
    %10 = vsyncpa [#allocation4], 0
    // Predicated region
    $region2: #{subnet_forward.1} parent=1 // pred_check
      _
    $region3: #{subnet_forward.1} parent=1 // pred_check_branch
      %12 = sbr.rel (0) target = $region5
    $region4: #{subnet_forward.1} parent=1 // pred_region
      %s14 = ssub.s32 256, 256
      %15 = vsyncadd [#allocation3], %s14
      %s17 = sshll.u32 [#allocation2], 4
      %s18 = int_to_ptr.vmem [resolvable:$true] %s17
      %20 = dma.hbm_to_vmem [thread:$0]  %s0, 256, %s18, [#allocation3]
    $region5: #{subnet_forward.1} parent=1 // pred_fallthru
      _
    // Predicated region
    $region6: #{subnet_forward.1} parent=1 // pred_check
      _
    $region7: #{subnet_forward.1} parent=1 // pred_check_branch
      %22 = sbr.rel (0) target = $region9
    $region8: #{subnet_forward.1} parent=1 // pred_region
      %s24 = ssub.s32 2048, 2048
      %25 = vsyncadd [#allocation6], %s24
      %s26 = sshll.u32 [#allocation5], 4
      %s27 = int_to_ptr.vmem [resolvable:$true] %s26
      %32 = dma.hbm_to_vmem [thread:$0]  %s1, 2048, %s27, [#allocation6], 64, 64, 4
    $region9: #{subnet_forward.1} parent=1 // pred_fallthru
      _
    // Predicated region
    $region10: #{subnet_forward.1} parent=1 // pred_check
      _
    $region11: #{subnet_forward.1} parent=1 // pred_check_branch
      %34 = sbr.rel (0) target = $region13
    $region12: #{subnet_forward.1} parent=1 // pred_region
      _
    $region13: #{subnet_forward.1} parent=1 // pred_fallthru
      _
    // Predicated region
    $region14: #{subnet_forward.1} parent=1 // pred_check
      _
    $region15: #{subnet_forward.1} parent=1 // pred_check_branch
      %36 = sbr.rel (0) target = $region17
    $region16: #{subnet_forward.1} parent=1 // pred_region
      %37 = dma.done [#allocation3], 256
    $region17: #{subnet_forward.1} parent=1 // pred_fallthru
      _
    // Predicated region
    $region18: #{subnet_forward.1} parent=1 // pred_check
      _
    $region19: #{subnet_forward.1} parent=1 // pred_check_branch
      %39 = sbr.rel (0) target = $region21
    $region20: #{subnet_forward.1} parent=1 // pred_region
      %40 = dma.done [#allocation6], 2048
    $region21: #{subnet_forward.1} parent=1 // pred_fallthru
      _
    %v42 = vld [vmem:[#allocation2] sm:$0xff]
    %v43 = vld [vmem:[#allocation2 + $0x8] sm:$0xff]
    %v44 = vpack.c.bf16 %v42, %v42
    %v45 = vpack.c.bf16 %v43, %v43
    %v46 = vld [vmem:[#allocation5] sm:$0xf]
    %v47 = vld [vmem:[#allocation5 + $0x4] sm:$0xf]
    %v48 = vld [vmem:[#allocation5 + $0x8] sm:$0xf]
    %v49 = vld [vmem:[#allocation5 + $0xc] sm:$0xf]
    %v50 = vld [vmem:[#allocation5 + $0x10] sm:$0xf]
    %v51 = vld [vmem:[#allocation5 + $0x14] sm:$0xf]
    %v52 = vld [vmem:[#allocation5 + $0x18] sm:$0xf]
    %v53 = vld [vmem:[#allocation5 + $0x1c] sm:$0xf]
    %v54 = vld [vmem:[#allocation5 + $0x20] sm:$0xf]
    %v55 = vld [vmem:[#allocation5 + $0x24] sm:$0xf]
    %v56 = vld [vmem:[#allocation5 + $0x28] sm:$0xf]
    %v57 = vld [vmem:[#allocation5 + $0x2c] sm:$0xf]
    %v58 = vld [vmem:[#allocation5 + $0x30] sm:$0xf]
    %v59 = vld [vmem:[#allocation5 + $0x34] sm:$0xf]
    %v60 = vld [vmem:[#allocation5 + $0x38] sm:$0xf]
    %v61 = vld [vmem:[#allocation5 + $0x3c] sm:$0xf]
    %v62 = vld [vmem:[#allocation5 + $0x40] sm:$0xf]
    %v63 = vld [vmem:[#allocation5 + $0x44] sm:$0xf]
    %v64 = vld [vmem:[#allocation5 + $0x48] sm:$0xf]
    %v65 = vld [vmem:[#allocation5 + $0x4c] sm:$0xf]
    %v66 = vld [vmem:[#allocation5 + $0x50] sm:$0xf]
    %v67 = vld [vmem:[#allocation5 + $0x54] sm:$0xf]
    %v68 = vld [vmem:[#allocation5 + $0x58] sm:$0xf]
    %v69 = vld [vmem:[#allocation5 + $0x5c] sm:$0xf]
    %v70 = vld [vmem:[#allocation5 + $0x60] sm:$0xf]
    %v71 = vld [vmem:[#allocation5 + $0x64] sm:$0xf]
    %v72 = vld [vmem:[#allocation5 + $0x68] sm:$0xf]
    %v73 = vld [vmem:[#allocation5 + $0x6c] sm:$0xf]
    %v74 = vld [vmem:[#allocation5 + $0x70] sm:$0xf]
    %v75 = vld [vmem:[#allocation5 + $0x74] sm:$0xf]
    %v76 = vld [vmem:[#allocation5 + $0x78] sm:$0xf]
    %v77 = vld [vmem:[#allocation5 + $0x7c] sm:$0xf]
    %v78 = vld [vmem:[%s2] sm:$0x1]
    %v80 = vlaneseq
    %v81 = vshrl.u32 %v80, 7
    %v82 = vsub.s32 0, %v81
    %v83 = vrot.slane %v78, %v82
    %v117 = vunpack.c.l.b16 %v46
    %v118 = vunpack.c.l.b16 %v47
    %v119 = vunpack.c.l.b16 %v48
    %v120 = vunpack.c.l.b16 %v49
    %v121 = vunpack.c.l.b16 %v50
    %v122 = vunpack.c.l.b16 %v51
    %v123 = vunpack.c.l.b16 %v52
    %v124 = vunpack.c.l.b16 %v53
    %v125 = vunpack.c.l.b16 %v54
    %v126 = vunpack.c.l.b16 %v55
    %v127 = vunpack.c.l.b16 %v56
    %v128 = vunpack.c.l.b16 %v57
    %v129 = vunpack.c.l.b16 %v58
    %v130 = vunpack.c.l.b16 %v59
    %v131 = vunpack.c.l.b16 %v60
    %v132 = vunpack.c.l.b16 %v61
    %v133 = vunpack.c.l.b16 %v62
    %v134 = vunpack.c.l.b16 %v63
    %v135 = vunpack.c.l.b16 %v64
    %v136 = vunpack.c.l.b16 %v65
    %v137 = vunpack.c.l.b16 %v66
    %v138 = vunpack.c.l.b16 %v67
    %v139 = vunpack.c.l.b16 %v68
    %v140 = vunpack.c.l.b16 %v69
    %v141 = vunpack.c.l.b16 %v70
    %v142 = vunpack.c.l.b16 %v71
    %v143 = vunpack.c.l.b16 %v72
    %v144 = vunpack.c.l.b16 %v73
    %v145 = vunpack.c.l.b16 %v74
    %v146 = vunpack.c.l.b16 %v75
    %v147 = vunpack.c.l.b16 %v76
    %v148 = vunpack.c.l.b16 %v77
    %v149 = vpack.c.b16 %v118, %v117
    %v150 = vpack.c.b16 %v120, %v119
    %v151 = vpack.c.b16 %v122, %v121
    %v152 = vpack.c.b16 %v124, %v123
    %v153 = vpack.c.b16 %v126, %v125
    %v154 = vpack.c.b16 %v128, %v127
    %v155 = vpack.c.b16 %v130, %v129
    %v156 = vpack.c.b16 %v132, %v131
    %v157 = vpack.c.b16 %v134, %v133
    %v158 = vpack.c.b16 %v136, %v135
    %v159 = vpack.c.b16 %v138, %v137
    %v160 = vpack.c.b16 %v140, %v139
    %v161 = vpack.c.b16 %v142, %v141
    %v162 = vpack.c.b16 %v144, %v143
    %v163 = vpack.c.b16 %v146, %v145
    %v164 = vpack.c.b16 %v148, %v147
    %181 = vmatprep.subr.bf16.mxu0 0
    %182 = vmatpush1.bf16.msra.mxu0 %v149
    %183 = vmatprep.subr.bf16.mxu0 0
    %184 = vmatpush1.bf16.msra.mxu0 %v150
    %185 = vmatprep.subr.bf16.mxu0 0
    %186 = vmatpush1.bf16.msra.mxu0 %v151
    %187 = vmatprep.subr.bf16.mxu0 0
    %188 = vmatpush1.bf16.msra.mxu0 %v152
    %189 = vmatprep.subr.bf16.mxu0 0
    %190 = vmatpush1.bf16.msra.mxu0 %v153
    %191 = vmatprep.subr.bf16.mxu0 0
    %192 = vmatpush1.bf16.msra.mxu0 %v154
    %193 = vmatprep.subr.bf16.mxu0 0
    %194 = vmatpush1.bf16.msra.mxu0 %v155
    %195 = vmatprep.subr.bf16.mxu0 0
    %196 = vmatpush1.bf16.msra.mxu0 %v156
    %197 = vmatprep.subr.bf16.mxu0 0
    %198 = vmatpush1.bf16.msra.mxu0 %v157
    %199 = vmatprep.subr.bf16.mxu0 0
    %200 = vmatpush1.bf16.msra.mxu0 %v158
    %201 = vmatprep.subr.bf16.mxu0 0
    %202 = vmatpush1.bf16.msra.mxu0 %v159
    %203 = vmatprep.subr.bf16.mxu0 0
    %204 = vmatpush1.bf16.msra.mxu0 %v160
    %205 = vmatprep.subr.bf16.mxu0 0
    %206 = vmatpush1.bf16.msra.mxu0 %v161
    %207 = vmatprep.subr.bf16.mxu0 0
    %208 = vmatpush1.bf16.msra.mxu0 %v162
    %209 = vmatprep.subr.bf16.mxu0 0
    %210 = vmatpush1.bf16.msra.mxu0 %v163
    %211 = vmatprep.subr.bf16.mxu0 0
    %212 = vmatpush1.bf16.msra.mxu0 %v164
    %213 = vmatprep.mubr.bf16.mxu0 %v45
    %214 = vmatmul.mubr.bf16.gmra.mrb[0].mxu0 %v44
    %v215 = vpop.f32.mrb[0].mxu0
    %v216 = vadd.f32 %v83, %v215
    %v217 = vpop.f32.mrb[0].mxu0
    %v218 = vpop.f32.mrb[0].mxu0
    %v219 = vpop.f32.mrb[0].mxu0
    %220 = vdwg.mxu0
    %v221 = vxor.u32 %v216, 2147483648
    %v222 = vmul.f32 %v221, 1.442695
    %v223 = vpow.pop %v222
    %v224 = vadd.f32 %v223, 1.0
    %v225 = vrcp.pop %v224
    %v226 = vmul.f32 1.0, %v225
    %227 = vst [vmem:[#allocation7] sm:$0xff] %v226
    // Predicated region
    $region22: #{subnet_forward.1} parent=1 // pred_check
      _
    $region23: #{subnet_forward.1} parent=1 // pred_check_branch
      %229 = sbr.rel (0) target = $region25
    $region24: #{subnet_forward.1} parent=1 // pred_region
      %s231 = ssub.s32 128, 128
      %232 = vsyncadd [#allocation4], %s231
      %s234 = sshll.u32 [#allocation7], 4
      %s235 = int_to_ptr.vmem [resolvable:$true] %s234
      %237 = dma.vmem_to_hbm [thread:$0]  %s235, 128, %s3, [#allocation4]
    $region25: #{subnet_forward.1} parent=1 // pred_fallthru
      _
    // Predicated region
    $region26: #{subnet_forward.1} parent=1 // pred_check
      _
    $region27: #{subnet_forward.1} parent=1 // pred_check_branch
      %239 = sbr.rel (0) target = $region29
    $region28: #{subnet_forward.1} parent=1 // pred_region
      %240 = dma.done [#allocation4], 128
    $region29: #{subnet_forward.1} parent=1 // pred_fallthru
      _
    %241 = vsyncpa [#allocation3], 1
    %242 = vsyncpa [#allocation6], 1
    %243 = vsyncpa [#allocation4], 1

</llo_original>
